<compile_context>
chip_gen: v7x
topology: tpu7x:2x2x1
jax: 0.10.0
libtpu: 0.0.40
codegen_flags: <defaults>
</compile_context>

<pallas_src>
import functools

import jax
import jax.numpy as jnp
from jax.experimental import pallas as pl
from jax.experimental.pallas import tpu as pltpu


def generator_kernel(x_ref, w_ref, b_ref, out_ref):
    # x_ref:  [TM, D]   (row tile of the flattened input)
    # w_ref:  [D,  V]   (resident across the whole grid)
    # b_ref:  [1,  V]
    # out_ref:[TM, V]
    x = x_ref[...].astype(jnp.float32)
    w = w_ref[...].astype(jnp.float32)
    b = b_ref[...].astype(jnp.float32)

    # Linear projection on the MXU, f32 accumulation.
    z = jnp.dot(x, w, preferred_element_type=jnp.float32) + b          # [TM, V]

    # Numerically-stable log_softmax along the last (lane) axis.
    m = jnp.max(z, axis=-1, keepdims=True)                             # [TM, 1]
    e = jnp.exp(z - m)                                                 # EUP
    lse = jnp.log(jnp.sum(e, axis=-1, keepdims=True))                  # [TM, 1]
    out_ref[...] = (z - m - lse).astype(out_ref.dtype)


def generator(x, w, b, *, row_tile=128):
    """log_softmax(x @ w + b, axis=-1) for x of shape [..., D]."""
    *lead, D = x.shape
    V = w.shape[1]
    N = 1
    for s in lead:
        N *= s
    x2 = x.reshape(N, D)

    # Pick a row tile that divides N and is a multiple of 8 (sublane width).
    tm = None
    for cand in (row_tile, 256, 128, 64, 32, 16, 8):
        if N % cand == 0:
            tm = cand
            break
    if tm is None:
        tm = N  # full-array block (always legal)

    grid = (N // tm,)

    out2 = pl.pallas_call(
        generator_kernel,
        out_shape=jax.ShapeDtypeStruct((N, V), x.dtype),
        grid_spec=pltpu.PrefetchScalarGridSpec(
            num_scalar_prefetch=0,
            grid=grid,
            in_specs=[
                pl.BlockSpec((tm, D), lambda i: (i, 0)),   # row tile of x
                pl.BlockSpec((D, V), lambda i: (0, 0)),    # weight: resident
                pl.BlockSpec((1, V), lambda i: (0, 0)),    # bias:   resident
            ],
            out_specs=pl.BlockSpec((tm, V), lambda i: (i, 0)),
        ),
        compiler_params=pltpu.CompilerParams(
            dimension_semantics=("parallel",),
            vmem_limit_bytes=64 * 1024 * 1024,
        ),
    )(x2, w, b)

    return out2.reshape(*lead, V)


def generator_ref(x, w, b):
    """Pure-JAX reference mirroring the PyTorch forward."""
    z = x @ w + b
    return jax.nn.log_softmax(z, axis=-1)


if __name__ == "__main__":
    # d_model = 32, vocab = 128 (lane-dense), batch = 2, seq = 8  ->  N = 16 rows.
    B, S, D, V = 2, 8, 32, 128

    key = jax.random.PRNGKey(0)
    kx, kw, kb = jax.random.split(key, 3)
    x = jax.random.normal(kx, (B, S, D), dtype=jnp.float32)
    w = (0.05 * jax.random.normal(kw, (D, V))).astype(jnp.float32)   # [d_model, vocab]
    b = (0.05 * jax.random.normal(kb, (1, V))).astype(jnp.float32)

    out = generator(x, w, b)
    jax.block_until_ready(out)

    ref = generator_ref(x, w, b.reshape(V))
    assert out.shape == (B, S, V)
    assert jnp.allclose(out, ref, atol=1e-5, rtol=1e-5), "mismatch vs JAX reference"
    print("KERNEL_OK")
</pallas_src>

<mosaic_0001>
module attributes {stable_mosaic.version = 11 : i64} {
  func.func @generator_kernel(%arg0: i32, %arg1: memref<16x32xf32, #tpu.memory_space<vmem>>, %arg2: memref<32x128xf32, #tpu.memory_space<vmem>>, %arg3: memref<1x128xf32, #tpu.memory_space<vmem>>, %arg4: memref<16x128xf32, #tpu.memory_space<vmem>>) attributes {dimension_semantics = [#tpu.dimension_semantics<parallel>], iteration_bounds = array<i64: 1>, scalar_prefetch = 0 : i64, scratch_operands = 0 : i64, tpu.core_type = #tpu.core_type<tc>, window_params = [{transform_indices = @transform_0, window_bounds = array<i64: 16, 32>}, {pipeline_mode = #tpu.pipeline_mode<synchronous>, transform_indices = @transform_1, window_bounds = array<i64: 32, 128>}, {pipeline_mode = #tpu.pipeline_mode<synchronous>, transform_indices = @transform_2, window_bounds = array<i64: 1, 128>}, {transform_indices = @transform_3, window_bounds = array<i64: 16, 128>}]} {
    %c0 = arith.constant 0 : index
    %c0_0 = arith.constant 0 : index
    %0 = vector.load %arg1[%c0, %c0_0] : memref<16x32xf32, #tpu.memory_space<vmem>>, vector<16x32xf32>
    %c0_1 = arith.constant 0 : index
    %c0_2 = arith.constant 0 : index
    %1 = vector.load %arg2[%c0_1, %c0_2] : memref<32x128xf32, #tpu.memory_space<vmem>>, vector<32x128xf32>
    %c0_3 = arith.constant 0 : index
    %c0_4 = arith.constant 0 : index
    %2 = vector.load %arg3[%c0_3, %c0_4] : memref<1x128xf32, #tpu.memory_space<vmem>>, vector<1x128xf32>
    %cst = arith.constant dense<0.000000e+00> : vector<16x128xf32>
    %3 = tpu.matmul %0, %1, %cst {dimension_numbers = #tpu.dot_dimension_numbers<[1], [0], [0], [1], [0, 0, 1, 1], [], []>} : vector<16x32xf32>, vector<32x128xf32>, vector<16x128xf32> -> vector<16x128xf32>
    %4 = vector.broadcast %2 : vector<1x128xf32> to vector<16x128xf32>
    %5 = arith.addf %3, %4 : vector<16x128xf32>
    %cst_5 = arith.constant dense<0xFF800000> : vector<16xf32>
    %6 = vector.multi_reduction <maximumf>, %5, %cst_5 [1] : vector<16x128xf32> to vector<16xf32>
    %7 = vector.shape_cast %6 : vector<16xf32> to vector<16x1xf32>
    %8 = vector.broadcast %7 : vector<16x1xf32> to vector<16x128xf32>
    %9 = arith.subf %5, %8 : vector<16x128xf32>
    %10 = math.exp %9 : vector<16x128xf32>
    %cst_6 = arith.constant dense<0.000000e+00> : vector<16xf32>
    %11 = vector.multi_reduction <add>, %10, %cst_6 [1] : vector<16x128xf32> to vector<16xf32>
    %12 = vector.shape_cast %11 : vector<16xf32> to vector<16x1xf32>
    %13 = math.log %12 : vector<16x1xf32>
    %14 = vector.broadcast %7 : vector<16x1xf32> to vector<16x128xf32>
    %15 = arith.subf %5, %14 : vector<16x128xf32>
    %16 = vector.broadcast %13 : vector<16x1xf32> to vector<16x128xf32>
    %17 = arith.subf %15, %16 : vector<16x128xf32>
    %c0_7 = arith.constant 0 : index
    %c0_8 = arith.constant 0 : index
    %18 = vector.load %arg4[%c0_7, %c0_8] : memref<16x128xf32, #tpu.memory_space<vmem>>, vector<16x128xf32>
    tpu.vector_store %arg4[%c0_7, %c0_8], %17 {strides = array<i32>} : memref<16x128xf32, #tpu.memory_space<vmem>>, vector<16x128xf32>,
    return
  }
  func.func @transform_0(%arg0: i32) -> (i32, i32) {
    %c0_i32 = arith.constant 0 : i32
    %c0_i32_0 = arith.constant 0 : i32
    return %arg0, %c0_i32 : i32, i32
  }
  func.func @transform_1(%arg0: i32) -> (i32, i32) {
    %c0_i32 = arith.constant 0 : i32
    %c0_i32_0 = arith.constant 0 : i32
    %c0_i32_1 = arith.constant 0 : i32
    return %c0_i32, %c0_i32_0 : i32, i32
  }
  func.func @transform_2(%arg0: i32) -> (i32, i32) {
    %c0_i32 = arith.constant 0 : i32
    %c0_i32_0 = arith.constant 0 : i32
    %c0_i32_1 = arith.constant 0 : i32
    return %c0_i32, %c0_i32_0 : i32, i32
  }
  func.func @transform_3(%arg0: i32) -> (i32, i32) {
    %c0_i32 = arith.constant 0 : i32
    %c0_i32_0 = arith.constant 0 : i32
    return %arg0, %c0_i32 : i32, i32
  }
}

</mosaic_0001>

<llo_original>
// kernel: tpu_custom_call.1
$region0: #{tpu_custom_call.1}
  #allocation0 [shape = 'u32[]', space=smem, size = 0x4, offset = 0x4, fixed_abs, tag = 'smem constant byte address 0x4 - core index']
  #allocation1 [shape = 'u32[144,128]{1,0:T(1,128)}', space=vmem, size = 0x12000, scoped, tag = 'internal scratch']
  %s0 = inlined_call_operand.hbm [shape: f32[16,32], index: 0, kind: input, shape index: {}]
  %s1 = inlined_call_operand.hbm [shape: f32[32,128], index: 1, kind: input, shape index: {}]
  %s2 = inlined_call_operand.hbm [shape: f32[1,128], index: 2, kind: input, shape index: {}]
  %s3 = inlined_call_operand.hbm [shape: f32[16,128], index: 3, kind: output, shape index: {}]
  %s4 = sld [smem:[#allocation0]]
  $region34: #{tpu_custom_call.1} parent=0
    _
  %s6 = ssub.s32 1, %s4
  %s7 = scalar_select 0, %s6, %s4
  $region1: #{tpu_custom_call.1} parent=0
    #allocation2 [shape = 'u8[8192]{0}', space=vmem, size = 0x2000, scoped, tag = 'input window, operand 0, single buffered']
    #allocation3 [shape = 's32[1]{0}', space=sflag, size = 0x4, scoped, tag = 'scoped memory for tpu_custom_call.1']
    #allocation4 [shape = 's32[1]{0}', space=sflag, size = 0x4, scoped, tag = 'scoped memory for tpu_custom_call.1']
    #allocation5 [shape = 'u8[16384]{0}', space=vmem, size = 0x4000, scoped, tag = 'input window, operand 1, single buffered']
    #allocation6 [shape = 's32[1]{0}', space=sflag, size = 0x4, scoped, tag = 'scoped memory for tpu_custom_call.1']
    #allocation7 [shape = 'u8[512]{0}', space=vmem, size = 0x400, scoped, tag = 'input window, operand 2, single buffered']
    #allocation8 [shape = 'u8[8192]{0}', space=vmem, size = 0x2000, scoped, tag = 'output window, operand 0, single buffered']
    %8 = vsyncpa [#allocation3], 0
    %9 = vsyncpa [#allocation6], 0
    %10 = vsyncpa [#allocation4], 0
    // Predicated region
    $region2: #{tpu_custom_call.1} parent=1 // pred_check
      _
    $region3: #{tpu_custom_call.1} parent=1 // pred_check_branch
      %12 = sbr.rel (0) target = $region5
    $region4: #{tpu_custom_call.1} parent=1 // pred_region
      %s14 = ssub.s32 256, 256
      %15 = vsyncadd [#allocation3], %s14
      %s16 = sshll.u32 [#allocation2], 4
      %s17 = int_to_ptr.vmem [resolvable:$true] %s16
      %22 = dma.hbm_to_vmem [thread:$0]  %s0, 256, %s17, [#allocation3], 128, 128, 8
    $region5: #{tpu_custom_call.1} parent=1 // pred_fallthru
      _
    // Predicated region
    $region6: #{tpu_custom_call.1} parent=1 // pred_check
      _
    $region7: #{tpu_custom_call.1} parent=1 // pred_check_branch
      %24 = sbr.rel (0) target = $region9
    $region8: #{tpu_custom_call.1} parent=1 // pred_region
      %s26 = ssub.s32 512, 512
      %27 = vsyncadd [#allocation6], %s26
      %s28 = sshll.u32 [#allocation5], 4
      %s29 = int_to_ptr.vmem [resolvable:$true] %s28
      %34 = dma.hbm_to_vmem [thread:$0]  %s1, 512, %s29, [#allocation6], 128, 128, 8
    $region9: #{tpu_custom_call.1} parent=1 // pred_fallthru
      _
    // Predicated region
    $region10: #{tpu_custom_call.1} parent=1 // pred_check
      _
    $region11: #{tpu_custom_call.1} parent=1 // pred_check_branch
      %36 = sbr.rel (0) target = $region13
    $region12: #{tpu_custom_call.1} parent=1 // pred_region
      %s38 = ssub.s32 16, 16
      %39 = vsyncadd [#allocation6], %s38
      %s41 = sshll.u32 [#allocation7], 4
      %s42 = int_to_ptr.vmem [resolvable:$true] %s41
      %44 = dma.hbm_to_vmem [thread:$0]  %s2, 16, %s42, [#allocation6]
    $region13: #{tpu_custom_call.1} parent=1 // pred_fallthru
      _
    // Predicated region
    $region14: #{tpu_custom_call.1} parent=1 // pred_check
      _
    $region15: #{tpu_custom_call.1} parent=1 // pred_check_branch
      %46 = sbr.rel (0) target = $region17
    $region16: #{tpu_custom_call.1} parent=1 // pred_region
      %47 = dma.done [#allocation3], 256
    $region17: #{tpu_custom_call.1} parent=1 // pred_fallthru
      _
    // Predicated region
    $region18: #{tpu_custom_call.1} parent=1 // pred_check
      _
    $region19: #{tpu_custom_call.1} parent=1 // pred_check_branch
      %49 = sbr.rel (0) target = $region21
    $region20: #{tpu_custom_call.1} parent=1 // pred_region
      %50 = dma.done [#allocation6], 512
    $region21: #{tpu_custom_call.1} parent=1 // pred_fallthru
      _
    // Predicated region
    $region22: #{tpu_custom_call.1} parent=1 // pred_check
      _
    $region23: #{tpu_custom_call.1} parent=1 // pred_check_branch
      %52 = sbr.rel (0) target = $region25
    $region24: #{tpu_custom_call.1} parent=1 // pred_region
      %53 = dma.done [#allocation6], 16
    $region25: #{tpu_custom_call.1} parent=1 // pred_fallthru
      _
    %v54 = vld [vmem:[#allocation2] sm:$0xff]
    %v55 = vld [vmem:[#allocation2 + $0x8] sm:$0xff]
    %v56 = vld [vmem:[#allocation5] sm:$0xff]
    %v57 = vld [vmem:[#allocation5 + $0x8] sm:$0xff]
    %v58 = vld [vmem:[#allocation5 + $0x10] sm:$0xff]
    %v59 = vld [vmem:[#allocation5 + $0x18] sm:$0xff]
    %v60 = vld [vmem:[#allocation7] sm:$0x1]
    %v62 = vlaneseq
    %v63 = vshrl.u32 %v62, 7
    %v64 = vsub.s32 0, %v63
    %v65 = vrot.slane %v60, %v64
    %vm67 = vcmask 261120
    %v69 = vsel %vm67, %v54, 0
    %v72 = vsel %vm67, %v55, 0
    %74 = vmatprep.subr.mxu0 0.0
    %75 = vmatpush1.msra.mxu0 %v56
    %76 = vmatprep.subr.mxu0 0.0
    %77 = vmatpush1.msra.mxu0 %v57
    %78 = vmatprep.subr.mxu0 0.0
    %79 = vmatpush1.msra.mxu0 %v58
    %80 = vmatprep.subr.mxu0 0.0
    %81 = vmatpush1.msra.mxu0 %v59
    %82 = vmatprep.subr.mxu0 0.0
    %83 = vmatpush1.msra.mxu0 0.0
    %84 = vmatprep.subr.mxu0 0.0
    %85 = vmatpush1.msra.mxu0 0.0
    %86 = vmatprep.subr.mxu0 0.0
    %87 = vmatpush1.msra.mxu0 0.0
    %88 = vmatprep.subr.mxu0 0.0
    %89 = vmatpush1.msra.mxu0 0.0
    %90 = vmatprep.subr.mxu0 0.0
    %91 = vmatpush1.msra.mxu0 0.0
    %92 = vmatprep.subr.mxu0 0.0
    %93 = vmatpush1.msra.mxu0 0.0
    %94 = vmatprep.subr.mxu0 0.0
    %95 = vmatpush1.msra.mxu0 0.0
    %96 = vmatprep.subr.mxu0 0.0
    %97 = vmatpush1.msra.mxu0 0.0
    %98 = vmatprep.subr.mxu0 0.0
    %99 = vmatpush1.msra.mxu0 0.0
    %100 = vmatprep.subr.mxu0 0.0
    %101 = vmatpush1.msra.mxu0 0.0
    %102 = vmatprep.subr.mxu0 0.0
    %103 = vmatpush1.msra.mxu0 0.0
    %104 = vmatprep.subr.mxu0 0.0
    %105 = vmatpush1.msra.mxu0 0.0
    %106 = vmatprep.subr.mxu0 0.0
    %107 = vmatpush1.msra.mxu0 0.0
    %108 = vmatprep.subr.mxu0 0.0
    %109 = vmatpush1.msra.mxu0 0.0
    %110 = vmatprep.subr.mxu0 0.0
    %111 = vmatpush1.msra.mxu0 0.0
    %112 = vmatprep.subr.mxu0 0.0
    %113 = vmatpush1.msra.mxu0 0.0
    %114 = vmatprep.subr.mxu0 0.0
    %115 = vmatpush1.msra.mxu0 0.0
    %116 = vmatprep.subr.mxu0 0.0
    %117 = vmatpush1.msra.mxu0 0.0
    %118 = vmatprep.subr.mxu0 0.0
    %119 = vmatpush1.msra.mxu0 0.0
    %120 = vmatprep.subr.mxu0 0.0
    %121 = vmatpush1.msra.mxu0 0.0
    %122 = vmatprep.subr.mxu0 0.0
    %123 = vmatpush1.msra.mxu0 0.0
    %124 = vmatprep.subr.mxu0 0.0
    %125 = vmatpush1.msra.mxu0 0.0
    %126 = vmatprep.subr.mxu0 0.0
    %127 = vmatpush1.msra.mxu0 0.0
    %128 = vmatprep.subr.mxu0 0.0
    %129 = vmatpush1.msra.mxu0 0.0
    %130 = vmatprep.subr.mxu0 0.0
    %131 = vmatpush1.msra.mxu0 0.0
    %132 = vmatprep.subr.mxu0 0.0
    %133 = vmatpush1.msra.mxu0 0.0
    %134 = vmatprep.subr.mxu0 0.0
    %135 = vmatpush1.msra.mxu0 0.0
    %136 = vmatprep.subr.mxu0 0.0
    %137 = vmatpush1.msra.mxu0 0.0
    %138 = vmatprep.mubr.f32.mxu0 0.0
    %139 = vmatmul.mubr.f32.gmra.mrb[0].mxu0 %v69
    %v140 = vpop.f32.mrb[0].mxu0
    %v141 = vadd.f32 %v65, %v140
    %v142 = vpop.f32.mrb[0].mxu0
    %143 = vmatprep.mubr.f32.mxu0 0.0
    %144 = vmatmul.mubr.f32.gmra.mrb[0].mxu0 %v72
    %v145 = vpop.f32.mrb[0].mxu0
    %v146 = vadd.f32 %v65, %v145
    %v147 = vpop.f32.mrb[0].mxu0
    %148 = vdwg.mxu0
    %149 = vmax.xlane.f32.xlu0 %v141
    %v150 = vpop.xlane.xlu0 %149
    %151 = vmax.xlane.f32.xlu0 %v146
    %v152 = vpop.xlane.xlu0 %151
    %v153 = vsub.f32 %v141, %v150
    %v154 = vsub.f32 %v146, %v152
    %v155 = vmul.f32 %v153, 1.442695
    %v156 = vpow.pop %v155
    %v157 = vmul.f32 %v154, 1.442695
    %v158 = vpow.pop %v157
    %159 = vadd.xlane.f32.xlu0 %v156
    %v160 = vpop.xlane.xlu0 %159
    %161 = vadd.xlane.f32.xlu0 %v158
    %v162 = vpop.xlane.xlu0 %161
    %v163 = vlog2.pop %v160
    %v164 = vmul.f32 %v163, 0.6931472
    %v165 = vlog2.pop %v162
    %v166 = vmul.f32 %v165, 0.6931472
    %v167 = vsub.f32 %v153, %v164
    %v168 = vsub.f32 %v154, %v166
    %169 = vst [vmem:[#allocation8] sm:$0xff] %v167
    %170 = vst [vmem:[#allocation8 + $0x8] sm:$0xff] %v168
    // Predicated region
    $region26: #{tpu_custom_call.1} parent=1 // pred_check
      _
    $region27: #{tpu_custom_call.1} parent=1 // pred_check_branch
      %172 = sbr.rel (0) target = $region29
    $region28: #{tpu_custom_call.1} parent=1 // pred_region
      %s174 = ssub.s32 256, 256
      %175 = vsyncadd [#allocation4], %s174
      %s176 = sshll.u32 [#allocation8], 4
      %s177 = int_to_ptr.vmem [resolvable:$true] %s176
      %182 = dma.vmem_to_hbm [thread:$0]  %s177, 256, %s3, [#allocation4], 128, 128, 8
    $region29: #{tpu_custom_call.1} parent=1 // pred_fallthru
      _
    // Predicated region
    $region30: #{tpu_custom_call.1} parent=1 // pred_check
      _
    $region31: #{tpu_custom_call.1} parent=1 // pred_check_branch
      %184 = sbr.rel (0) target = $region33
    $region32: #{tpu_custom_call.1} parent=1 // pred_region
      %185 = dma.done [#allocation4], 256
    $region33: #{tpu_custom_call.1} parent=1 // pred_fallthru
      _
    %186 = vsyncpa [#allocation3], 1
    %187 = vsyncpa [#allocation6], 1
    %188 = vsyncpa [#allocation4], 1

</llo_original>
